<compile_context>
chip_gen: v6e
topology: v6e:2x2x1
jax: 0.10.0
libtpu: 0.0.40
codegen_flags: <defaults>
</compile_context>

<pallas_src>
import jax
import jax.numpy as jnp
from jax.experimental import pallas as pl
from jax.experimental.pallas import tpu as pltpu


# Tensors with fewer elements than this use plain jnp.sum (XLA fuses them).
_PALLAS_MIN_ELEMENTS = 1 << 15          # 32768
# Per-input-buffer VMEM target (the Pallas pipeline double-buffers it).
_INPUT_BUF_BUDGET = 4 * 1024 * 1024     # 4 MiB
_MAX_ROW_TILE = 4096
_VMEM_LIMIT = 32 * 1024 * 1024          # safe scoped-VMEM on v5e / v6e / v7x


def _round_up(x, m):
    return ((x + m - 1) // m) * m


def _sum_last_kernel(x_ref, o_ref):
    # Reduce the full (un-padded) lane extent of this row tile.
    # Accumulate in f32 regardless of the input dtype, cast back on store.
    x = x_ref[...]
    s = jnp.sum(x.astype(jnp.float32), axis=-1, keepdims=True)
    o_ref[...] = s.astype(o_ref.dtype)


@jax.jit
def _sum_last_dim_2d(x2d):
    """x2d: (R, C) -> (R, 1) sums over the last dim via Pallas."""
    R, C = x2d.shape
    itemsize = jnp.dtype(x2d.dtype).itemsize

    # Row tile: as big as the VMEM budget allows (large DMAs amortize the
    # ~0.35us per-grid-step overhead); multiple of 8; never exceeds the
    # (row-rounded) array extent; columns are never padded.
    row_tile = _INPUT_BUF_BUDGET // max(1, C * itemsize)
    row_tile = max(8, min(row_tile, _MAX_ROW_TILE, _round_up(R, 8)))
    row_tile = max(8, (row_tile // 8) * 8)

    grid = (pl.cdiv(R, row_tile),)

    return pl.pallas_call(
        _sum_last_kernel,
        out_shape=jax.ShapeDtypeStruct((R, 1), x2d.dtype),
        grid_spec=pltpu.PrefetchScalarGridSpec(
            num_scalar_prefetch=0,
            grid=grid,
            # Lane block dim == full C  -> legal for any C, no padding pass.
            # Row remainder of the last block is masked by Pallas.
            in_specs=[pl.BlockSpec((row_tile, C), lambda i: (i, 0))],
            out_specs=pl.BlockSpec((row_tile, 1), lambda i: (i, 0)),
        ),
        compiler_params=pltpu.CompilerParams(
            dimension_semantics=("parallel",),   # rows shard across v7x's 2 TCs
            vmem_limit_bytes=_VMEM_LIMIT,
        ),
    )(x2d)


def sum_last_dim(tensor):
    """Equivalent of torch tensor.sum(dim=-1) for an ND array."""
    shape = tensor.shape
    if len(shape) == 0:
        # 0-d tensor: torch sum over dim=-1 is invalid; not reachable here.
        return tensor
    last = shape[-1]
    lead = 1
    for d in shape[:-1]:
        lead *= d
    total = lead * last
    itemsize = jnp.dtype(tensor.dtype).itemsize
    # Tiny tensors, or rows so wide a minimum (8, C) double-buffered tile
    # would not fit comfortably in VMEM: let XLA handle them.
    if total < _PALLAS_MIN_ELEMENTS or 2 * 8 * last * itemsize > 24 * 1024 * 1024:
        return jnp.sum(tensor, axis=-1)
    x2d = tensor.reshape(lead, last)
    out = _sum_last_dim_2d(x2d)          # (lead, 1)
    return out.reshape(shape[:-1])


def pt_module_forward(inputs):
    """Mirror of PtModule.forward: list in, list of last-dim sums out."""
    return [sum_last_dim(t) for t in inputs]


if __name__ == "__main__":
    key = jax.random.PRNGKey(0)
    k1, k2, k3, k4 = jax.random.split(key, 4)

    # Small deterministic example inputs (a list of tensors, as the module expects).
    inputs = [
        jax.random.normal(k1, (2, 4, 16, 16), dtype=jnp.float32),   # tiny -> XLA path
        jax.random.normal(k2, (8, 32), dtype=jnp.float32),          # tiny -> XLA path
        jax.random.normal(k3, (2, 3, 5), dtype=jnp.float32),        # tiny -> XLA path
        jax.random.normal(k4, (4, 128, 192), dtype=jnp.float32),    # goes through Pallas
    ]

    results = pt_module_forward(inputs)
    results = [jax.block_until_ready(r) for r in results]

    # Correctness check against plain-JAX reference.
    for x, r in zip(inputs, results):
        ref = jnp.sum(x, axis=-1)
        assert r.shape == ref.shape, (r.shape, ref.shape)
        assert jnp.allclose(r, ref, atol=1e-4, rtol=1e-5), float(
            jnp.max(jnp.abs(r - ref))
        )

    print("KERNEL_OK")
</pallas_src>

<mosaic_0001>
module attributes {stable_mosaic.version = 11 : i64} {
  func.func @_sum_last_kernel(%arg0: i32, %arg1: memref<512x192xf32, #tpu.memory_space<vmem>>, %arg2: memref<512x1xf32, #tpu.memory_space<vmem>>) attributes {dimension_semantics = [#tpu.dimension_semantics<parallel>], iteration_bounds = array<i64: 1>, scalar_prefetch = 0 : i64, scratch_operands = 0 : i64, tpu.core_type = #tpu.core_type<tc>, window_params = [{transform_indices = @transform_0, window_bounds = array<i64: 512, 192>}, {transform_indices = @transform_1, window_bounds = array<i64: 512, 1>}]} {
    %c0 = arith.constant 0 : index
    %c0_0 = arith.constant 0 : index
    %0 = vector.load %arg1[%c0, %c0_0] : memref<512x192xf32, #tpu.memory_space<vmem>>, vector<512x192xf32>
    %cst = arith.constant dense<0.000000e+00> : vector<512xf32>
    %1 = vector.multi_reduction <add>, %0, %cst [1] : vector<512x192xf32> to vector<512xf32>
    %2 = vector.shape_cast %1 : vector<512xf32> to vector<512x1xf32>
    %c0_1 = arith.constant 0 : index
    %c0_2 = arith.constant 0 : index
    %3 = vector.load %arg2[%c0_1, %c0_2] : memref<512x1xf32, #tpu.memory_space<vmem>>, vector<512x1xf32>
    tpu.vector_store %arg2[%c0_1, %c0_2], %2 {strides = array<i32>} : memref<512x1xf32, #tpu.memory_space<vmem>>, vector<512x1xf32>,
    return
  }
  func.func @transform_0(%arg0: i32) -> (i32, i32) {
    %c0_i32 = arith.constant 0 : i32
    %c0_i32_0 = arith.constant 0 : i32
    return %arg0, %c0_i32 : i32, i32
  }
  func.func @transform_1(%arg0: i32) -> (i32, i32) {
    %c0_i32 = arith.constant 0 : i32
    %c0_i32_0 = arith.constant 0 : i32
    return %arg0, %c0_i32 : i32, i32
  }
}

</mosaic_0001>

<llo_original>
// kernel: _sum_last_dim_2d.1
$region0: #{_sum_last_dim_2d.1}
  #allocation0 [shape = 'u32[]', space=smem, size = 0x4, offset = 0x4, fixed_abs, tag = 'smem constant byte address 0x4 - core index']
  #allocation1 [shape = 'u32[144,128]{1,0:T(1,128)}', space=vmem, size = 0x12000, scoped, tag = 'internal scratch']
  %s0 = inlined_call_operand.vmem [shape: f32[512,192], index: 0, kind: input, shape index: {}]
  %s1 = inlined_call_operand.vmem [shape: f32[512,1], index: 1, kind: output, shape index: {}]
  %s2 = sld [smem:[#allocation0]]
  $region14: #{_sum_last_dim_2d.1} parent=0
    _
  %s4 = ssub.s32 1, %s2
  %s5 = scalar_select 0, %s4, %s2
  // Predicated region
  $region2: #{_sum_last_dim_2d.1} parent=0 // pred_check
    _
  $region3: #{_sum_last_dim_2d.1} parent=0 // pred_check_branch
    %7 = sbr.rel (0) target = $region5
  $region4: #{_sum_last_dim_2d.1} parent=0 // pred_region
    _
  $region5: #{_sum_last_dim_2d.1} parent=0 // pred_fallthru
    _
  %v8 = vld [vmem:[%s0] sm:$0xff]
  %v9 = vld [vmem:[%s0 + $0x8] sm:$0xff]
  %v10 = vld [vmem:[%s0 + $0x10] sm:$0xff]
  %v11 = vld [vmem:[%s0 + $0x18] sm:$0xff]
  %v12 = vld [vmem:[%s0 + $0x20] sm:$0xff]
  %v13 = vld [vmem:[%s0 + $0x28] sm:$0xff]
  %v14 = vld [vmem:[%s0 + $0x30] sm:$0xff]
  %v15 = vld [vmem:[%s0 + $0x38] sm:$0xff]
  %v16 = vld [vmem:[%s0 + $0x40] sm:$0xff]
  %v17 = vld [vmem:[%s0 + $0x48] sm:$0xff]
  %v18 = vld [vmem:[%s0 + $0x50] sm:$0xff]
  %v19 = vld [vmem:[%s0 + $0x58] sm:$0xff]
  %v20 = vld [vmem:[%s0 + $0x60] sm:$0xff]
  %v21 = vld [vmem:[%s0 + $0x68] sm:$0xff]
  %v22 = vld [vmem:[%s0 + $0x70] sm:$0xff]
  %v23 = vld [vmem:[%s0 + $0x78] sm:$0xff]
  %v24 = vld [vmem:[%s0 + $0x80] sm:$0xff]
  %v25 = vld [vmem:[%s0 + $0x88] sm:$0xff]
  %v26 = vld [vmem:[%s0 + $0x90] sm:$0xff]
  %v27 = vld [vmem:[%s0 + $0x98] sm:$0xff]
  %v28 = vld [vmem:[%s0 + $0xa0] sm:$0xff]
  %v29 = vld [vmem:[%s0 + $0xa8] sm:$0xff]
  %v30 = vld [vmem:[%s0 + $0xb0] sm:$0xff]
  %v31 = vld [vmem:[%s0 + $0xb8] sm:$0xff]
  %v32 = vld [vmem:[%s0 + $0xc0] sm:$0xff]
  %v33 = vld [vmem:[%s0 + $0xc8] sm:$0xff]
  %v34 = vld [vmem:[%s0 + $0xd0] sm:$0xff]
  %v35 = vld [vmem:[%s0 + $0xd8] sm:$0xff]
  %v36 = vld [vmem:[%s0 + $0xe0] sm:$0xff]
  %v37 = vld [vmem:[%s0 + $0xe8] sm:$0xff]
  %v38 = vld [vmem:[%s0 + $0xf0] sm:$0xff]
  %v39 = vld [vmem:[%s0 + $0xf8] sm:$0xff]
  %v40 = vld [vmem:[%s0 + $0x100] sm:$0xff]
  %v41 = vld [vmem:[%s0 + $0x108] sm:$0xff]
  %v42 = vld [vmem:[%s0 + $0x110] sm:$0xff]
  %v43 = vld [vmem:[%s0 + $0x118] sm:$0xff]
  %v44 = vld [vmem:[%s0 + $0x120] sm:$0xff]
  %v45 = vld [vmem:[%s0 + $0x128] sm:$0xff]
  %v46 = vld [vmem:[%s0 + $0x130] sm:$0xff]
  %v47 = vld [vmem:[%s0 + $0x138] sm:$0xff]
  %v48 = vld [vmem:[%s0 + $0x140] sm:$0xff]
  %v49 = vld [vmem:[%s0 + $0x148] sm:$0xff]
  %v50 = vld [vmem:[%s0 + $0x150] sm:$0xff]
  %v51 = vld [vmem:[%s0 + $0x158] sm:$0xff]
  %v52 = vld [vmem:[%s0 + $0x160] sm:$0xff]
  %v53 = vld [vmem:[%s0 + $0x168] sm:$0xff]
  %v54 = vld [vmem:[%s0 + $0x170] sm:$0xff]
  %v55 = vld [vmem:[%s0 + $0x178] sm:$0xff]
  %v56 = vld [vmem:[%s0 + $0x180] sm:$0xff]
  %v57 = vld [vmem:[%s0 + $0x188] sm:$0xff]
  %v58 = vld [vmem:[%s0 + $0x190] sm:$0xff]
  %v59 = vld [vmem:[%s0 + $0x198] sm:$0xff]
  %v60 = vld [vmem:[%s0 + $0x1a0] sm:$0xff]
  %v61 = vld [vmem:[%s0 + $0x1a8] sm:$0xff]
  %v62 = vld [vmem:[%s0 + $0x1b0] sm:$0xff]
  %v63 = vld [vmem:[%s0 + $0x1b8] sm:$0xff]
  %v64 = vld [vmem:[%s0 + $0x1c0] sm:$0xff]
  %v65 = vld [vmem:[%s0 + $0x1c8] sm:$0xff]
  %v66 = vld [vmem:[%s0 + $0x1d0] sm:$0xff]
  %v67 = vld [vmem:[%s0 + $0x1d8] sm:$0xff]
  %v68 = vld [vmem:[%s0 + $0x1e0] sm:$0xff]
  %v69 = vld [vmem:[%s0 + $0x1e8] sm:$0xff]
  %v70 = vld [vmem:[%s0 + $0x1f0] sm:$0xff]
  %v71 = vld [vmem:[%s0 + $0x1f8] sm:$0xff]
  %v72 = vld [vmem:[%s0 + $0x200] sm:$0xff]
  %v73 = vld [vmem:[%s0 + $0x208] sm:$0xff]
  %v74 = vld [vmem:[%s0 + $0x210] sm:$0xff]
  %v75 = vld [vmem:[%s0 + $0x218] sm:$0xff]
  %v76 = vld [vmem:[%s0 + $0x220] sm:$0xff]
  %v77 = vld [vmem:[%s0 + $0x228] sm:$0xff]
  %v78 = vld [vmem:[%s0 + $0x230] sm:$0xff]
  %v79 = vld [vmem:[%s0 + $0x238] sm:$0xff]
  %v80 = vld [vmem:[%s0 + $0x240] sm:$0xff]
  %v81 = vld [vmem:[%s0 + $0x248] sm:$0xff]
  %v82 = vld [vmem:[%s0 + $0x250] sm:$0xff]
  %v83 = vld [vmem:[%s0 + $0x258] sm:$0xff]
  %v84 = vld [vmem:[%s0 + $0x260] sm:$0xff]
  %v85 = vld [vmem:[%s0 + $0x268] sm:$0xff]
  %v86 = vld [vmem:[%s0 + $0x270] sm:$0xff]
  %v87 = vld [vmem:[%s0 + $0x278] sm:$0xff]
  %v88 = vld [vmem:[%s0 + $0x280] sm:$0xff]
  %v89 = vld [vmem:[%s0 + $0x288] sm:$0xff]
  %v90 = vld [vmem:[%s0 + $0x290] sm:$0xff]
  %v91 = vld [vmem:[%s0 + $0x298] sm:$0xff]
  %v92 = vld [vmem:[%s0 + $0x2a0] sm:$0xff]
  %v93 = vld [vmem:[%s0 + $0x2a8] sm:$0xff]
  %v94 = vld [vmem:[%s0 + $0x2b0] sm:$0xff]
  %v95 = vld [vmem:[%s0 + $0x2b8] sm:$0xff]
  %v96 = vld [vmem:[%s0 + $0x2c0] sm:$0xff]
  %v97 = vld [vmem:[%s0 + $0x2c8] sm:$0xff]
  %v98 = vld [vmem:[%s0 + $0x2d0] sm:$0xff]
  %v99 = vld [vmem:[%s0 + $0x2d8] sm:$0xff]
  %v100 = vld [vmem:[%s0 + $0x2e0] sm:$0xff]
  %v101 = vld [vmem:[%s0 + $0x2e8] sm:$0xff]
  %v102 = vld [vmem:[%s0 + $0x2f0] sm:$0xff]
  %v103 = vld [vmem:[%s0 + $0x2f8] sm:$0xff]
  %v104 = vld [vmem:[%s0 + $0x300] sm:$0xff]
  %v105 = vld [vmem:[%s0 + $0x308] sm:$0xff]
  %v106 = vld [vmem:[%s0 + $0x310] sm:$0xff]
  %v107 = vld [vmem:[%s0 + $0x318] sm:$0xff]
  %v108 = vld [vmem:[%s0 + $0x320] sm:$0xff]
  %v109 = vld [vmem:[%s0 + $0x328] sm:$0xff]
  %v110 = vld [vmem:[%s0 + $0x330] sm:$0xff]
  %v111 = vld [vmem:[%s0 + $0x338] sm:$0xff]
  %v112 = vld [vmem:[%s0 + $0x340] sm:$0xff]
  %v113 = vld [vmem:[%s0 + $0x348] sm:$0xff]
  %v114 = vld [vmem:[%s0 + $0x350] sm:$0xff]
  %v115 = vld [vmem:[%s0 + $0x358] sm:$0xff]
  %v116 = vld [vmem:[%s0 + $0x360] sm:$0xff]
  %v117 = vld [vmem:[%s0 + $0x368] sm:$0xff]
  %v118 = vld [vmem:[%s0 + $0x370] sm:$0xff]
  %v119 = vld [vmem:[%s0 + $0x378] sm:$0xff]
  %v120 = vld [vmem:[%s0 + $0x380] sm:$0xff]
  %v121 = vld [vmem:[%s0 + $0x388] sm:$0xff]
  %v122 = vld [vmem:[%s0 + $0x390] sm:$0xff]
  %v123 = vld [vmem:[%s0 + $0x398] sm:$0xff]
  %v124 = vld [vmem:[%s0 + $0x3a0] sm:$0xff]
  %v125 = vld [vmem:[%s0 + $0x3a8] sm:$0xff]
  %v126 = vld [vmem:[%s0 + $0x3b0] sm:$0xff]
  %v127 = vld [vmem:[%s0 + $0x3b8] sm:$0xff]
  %v128 = vld [vmem:[%s0 + $0x3c0] sm:$0xff]
  %v129 = vld [vmem:[%s0 + $0x3c8] sm:$0xff]
  %v130 = vld [vmem:[%s0 + $0x3d0] sm:$0xff]
  %v131 = vld [vmem:[%s0 + $0x3d8] sm:$0xff]
  %v132 = vld [vmem:[%s0 + $0x3e0] sm:$0xff]
  %v133 = vld [vmem:[%s0 + $0x3e8] sm:$0xff]
  %v134 = vld [vmem:[%s0 + $0x3f0] sm:$0xff]
  %v135 = vld [vmem:[%s0 + $0x3f8] sm:$0xff]
  %vm136 = vcmask 523264
  %v137 = vsel %vm136, %v9, 0.0
  %v138 = vadd.f32 %v8, %v137
  %139 = vadd.xlane.f32.xlu0 %v138
  %v140 = vpop.xlane.xlu0 %139
  %v141 = vsel %vm136, %v11, 0.0
  %v142 = vadd.f32 %v10, %v141
  %143 = vadd.xlane.f32.xlu0 %v142
  %v144 = vpop.xlane.xlu0 %143
  %v145 = vsel %vm136, %v13, 0.0
  %v146 = vadd.f32 %v12, %v145
  %147 = vadd.xlane.f32.xlu0 %v146
  %v148 = vpop.xlane.xlu0 %147
  %v149 = vsel %vm136, %v15, 0.0
  %v150 = vadd.f32 %v14, %v149
  %151 = vadd.xlane.f32.xlu0 %v150
  %v152 = vpop.xlane.xlu0 %151
  %v153 = vsel %vm136, %v17, 0.0
  %v154 = vadd.f32 %v16, %v153
  %155 = vadd.xlane.f32.xlu0 %v154
  %v156 = vpop.xlane.xlu0 %155
  %v157 = vsel %vm136, %v19, 0.0
  %v158 = vadd.f32 %v18, %v157
  %159 = vadd.xlane.f32.xlu0 %v158
  %v160 = vpop.xlane.xlu0 %159
  %v161 = vsel %vm136, %v21, 0.0
  %v162 = vadd.f32 %v20, %v161
  %163 = vadd.xlane.f32.xlu0 %v162
  %v164 = vpop.xlane.xlu0 %163
  %v165 = vsel %vm136, %v23, 0.0
  %v166 = vadd.f32 %v22, %v165
  %167 = vadd.xlane.f32.xlu0 %v166
  %v168 = vpop.xlane.xlu0 %167
  %v169 = vsel %vm136, %v25, 0.0
  %v170 = vadd.f32 %v24, %v169
  %171 = vadd.xlane.f32.xlu0 %v170
  %v172 = vpop.xlane.xlu0 %171
  %v173 = vsel %vm136, %v27, 0.0
  %v174 = vadd.f32 %v26, %v173
  %175 = vadd.xlane.f32.xlu0 %v174
  %v176 = vpop.xlane.xlu0 %175
  %v177 = vsel %vm136, %v29, 0.0
  %v178 = vadd.f32 %v28, %v177
  %179 = vadd.xlane.f32.xlu0 %v178
  %v180 = vpop.xlane.xlu0 %179
  %v181 = vsel %vm136, %v31, 0.0
  %v182 = vadd.f32 %v30, %v181
  %183 = vadd.xlane.f32.xlu0 %v182
  %v184 = vpop.xlane.xlu0 %183
  %v185 = vsel %vm136, %v33, 0.0
  %v186 = vadd.f32 %v32, %v185
  %187 = vadd.xlane.f32.xlu0 %v186
  %v188 = vpop.xlane.xlu0 %187
  %v189 = vsel %vm136, %v35, 0.0
  %v190 = vadd.f32 %v34, %v189
  %191 = vadd.xlane.f32.xlu0 %v190
  %v192 = vpop.xlane.xlu0 %191
  %v193 = vsel %vm136, %v37, 0.0
  %v194 = vadd.f32 %v36, %v193
  %195 = vadd.xlane.f32.xlu0 %v194
  %v196 = vpop.xlane.xlu0 %195
  %v197 = vsel %vm136, %v39, 0.0
  %v198 = vadd.f32 %v38, %v197
  %199 = vadd.xlane.f32.xlu0 %v198
  %v200 = vpop.xlane.xlu0 %199
  %v201 = vsel %vm136, %v41, 0.0
  %v202 = vadd.f32 %v40, %v201
  %203 = vadd.xlane.f32.xlu0 %v202
  %v204 = vpop.xlane.xlu0 %203
  %v205 = vsel %vm136, %v43, 0.0
  %v206 = vadd.f32 %v42, %v205
  %207 = vadd.xlane.f32.xlu0 %v206
  %v208 = vpop.xlane.xlu0 %207
  %v209 = vsel %vm136, %v45, 0.0
  %v210 = vadd.f32 %v44, %v209
  %211 = vadd.xlane.f32.xlu0 %v210
  %v212 = vpop.xlane.xlu0 %211
  %v213 = vsel %vm136, %v47, 0.0
  %v214 = vadd.f32 %v46, %v213
  %215 = vadd.xlane.f32.xlu0 %v214
  %v216 = vpop.xlane.xlu0 %215
  %v217 = vsel %vm136, %v49, 0.0
  %v218 = vadd.f32 %v48, %v217
  %219 = vadd.xlane.f32.xlu0 %v218
  %v220 = vpop.xlane.xlu0 %219
  %v221 = vsel %vm136, %v51, 0.0
  %v222 = vadd.f32 %v50, %v221
  %223 = vadd.xlane.f32.xlu0 %v222
  %v224 = vpop.xlane.xlu0 %223
  %v225 = vsel %vm136, %v53, 0.0
  %v226 = vadd.f32 %v52, %v225
  %227 = vadd.xlane.f32.xlu0 %v226
  %v228 = vpop.xlane.xlu0 %227
  %v229 = vsel %vm136, %v55, 0.0
  %v230 = vadd.f32 %v54, %v229
  %231 = vadd.xlane.f32.xlu0 %v230
  %v232 = vpop.xlane.xlu0 %231
  %v233 = vsel %vm136, %v57, 0.0
  %v234 = vadd.f32 %v56, %v233
  %235 = vadd.xlane.f32.xlu0 %v234
  %v236 = vpop.xlane.xlu0 %235
  %v237 = vsel %vm136, %v59, 0.0
  %v238 = vadd.f32 %v58, %v237
  %239 = vadd.xlane.f32.xlu0 %v238
  %v240 = vpop.xlane.xlu0 %239
  %v241 = vsel %vm136, %v61, 0.0
  %v242 = vadd.f32 %v60, %v241
  %243 = vadd.xlane.f32.xlu0 %v242
  %v244 = vpop.xlane.xlu0 %243
  %v245 = vsel %vm136, %v63, 0.0
  %v246 = vadd.f32 %v62, %v245
  %247 = vadd.xlane.f32.xlu0 %v246
  %v248 = vpop.xlane.xlu0 %247
  %v249 = vsel %vm136, %v65, 0.0
  %v250 = vadd.f32 %v64, %v249
  %251 = vadd.xlane.f32.xlu0 %v250
  %v252 = vpop.xlane.xlu0 %251
  %v253 = vsel %vm136, %v67, 0.0
  %v254 = vadd.f32 %v66, %v253
  %255 = vadd.xlane.f32.xlu0 %v254
  %v256 = vpop.xlane.xlu0 %255
  %v257 = vsel %vm136, %v69, 0.0
  %v258 = vadd.f32 %v68, %v257
  %259 = vadd.xlane.f32.xlu0 %v258
  %v260 = vpop.xlane.xlu0 %259
  %v261 = vsel %vm136, %v71, 0.0
  %v262 = vadd.f32 %v70, %v261
  %263 = vadd.xlane.f32.xlu0 %v262
  %v264 = vpop.xlane.xlu0 %263
  %v265 = vsel %vm136, %v73, 0.0
  %v266 = vadd.f32 %v72, %v265
  %267 = vadd.xlane.f32.xlu0 %v266
  %v268 = vpop.xlane.xlu0 %267
  %v269 = vsel %vm136, %v75, 0.0
  %v270 = vadd.f32 %v74, %v269
  %271 = vadd.xlane.f32.xlu0 %v270
  %v272 = vpop.xlane.xlu0 %271
  %v273 = vsel %vm136, %v77, 0.0
  %v274 = vadd.f32 %v76, %v273
  %275 = vadd.xlane.f32.xlu0 %v274
  %v276 = vpop.xlane.xlu0 %275
  %v277 = vsel %vm136, %v79, 0.0
  %v278 = vadd.f32 %v78, %v277
  %279 = vadd.xlane.f32.xlu0 %v278
  %v280 = vpop.xlane.xlu0 %279
  %v281 = vsel %vm136, %v81, 0.0
  %v282 = vadd.f32 %v80, %v281
  %283 = vadd.xlane.f32.xlu0 %v282
  %v284 = vpop.xlane.xlu0 %283
  %v285 = vsel %vm136, %v83, 0.0
  %v286 = vadd.f32 %v82, %v285
  %287 = vadd.xlane.f32.xlu0 %v286
  %v288 = vpop.xlane.xlu0 %287
  %v289 = vsel %vm136, %v85, 0.0
  %v290 = vadd.f32 %v84, %v289
  %291 = vadd.xlane.f32.xlu0 %v290
  %v292 = vpop.xlane.xlu0 %291
  %v293 = vsel %vm136, %v87, 0.0
  %v294 = vadd.f32 %v86, %v293
  %295 = vadd.xlane.f32.xlu0 %v294
  %v296 = vpop.xlane.xlu0 %295
  %v297 = vsel %vm136, %v89, 0.0
  %v298 = vadd.f32 %v88, %v297
  %299 = vadd.xlane.f32.xlu0 %v298
  %v300 = vpop.xlane.xlu0 %299
  %v301 = vsel %vm136, %v91, 0.0
  %v302 = vadd.f32 %v90, %v301
  %303 = vadd.xlane.f32.xlu0 %v302
  %v304 = vpop.xlane.xlu0 %303
  %v305 = vsel %vm136, %v93, 0.0
  %v306 = vadd.f32 %v92, %v305
  %307 = vadd.xlane.f32.xlu0 %v306
  %v308 = vpop.xlane.xlu0 %307
  %v309 = vsel %vm136, %v95, 0.0
  %v310 = vadd.f32 %v94, %v309
  %311 = vadd.xlane.f32.xlu0 %v310
  %v312 = vpop.xlane.xlu0 %311
  %v313 = vsel %vm136, %v97, 0.0
  %v314 = vadd.f32 %v96, %v313
  %315 = vadd.xlane.f32.xlu0 %v314
  %v316 = vpop.xlane.xlu0 %315
  %v317 = vsel %vm136, %v99, 0.0
  %v318 = vadd.f32 %v98, %v317
  %319 = vadd.xlane.f32.xlu0 %v318
  %v320 = vpop.xlane.xlu0 %319
  %v321 = vsel %vm136, %v101, 0.0
  %v322 = vadd.f32 %v100, %v321
  %323 = vadd.xlane.f32.xlu0 %v322
  %v324 = vpop.xlane.xlu0 %323
  %v325 = vsel %vm136, %v103, 0.0
  %v326 = vadd.f32 %v102, %v325
  %327 = vadd.xlane.f32.xlu0 %v326
  %v328 = vpop.xlane.xlu0 %327
  %v329 = vsel %vm136, %v105, 0.0
  %v330 = vadd.f32 %v104, %v329
  %331 = vadd.xlane.f32.xlu0 %v330
  %v332 = vpop.xlane.xlu0 %331
  %v333 = vsel %vm136, %v107, 0.0
  %v334 = vadd.f32 %v106, %v333
  %335 = vadd.xlane.f32.xlu0 %v334
  %v336 = vpop.xlane.xlu0 %335
  %v337 = vsel %vm136, %v109, 0.0
  %v338 = vadd.f32 %v108, %v337
  %339 = vadd.xlane.f32.xlu0 %v338
  %v340 = vpop.xlane.xlu0 %339
  %v341 = vsel %vm136, %v111, 0.0
  %v342 = vadd.f32 %v110, %v341
  %343 = vadd.xlane.f32.xlu0 %v342
  %v344 = vpop.xlane.xlu0 %343
  %v345 = vsel %vm136, %v113, 0.0
  %v346 = vadd.f32 %v112, %v345
  %347 = vadd.xlane.f32.xlu0 %v346
  %v348 = vpop.xlane.xlu0 %347
  %v349 = vsel %vm136, %v115, 0.0
  %v350 = vadd.f32 %v114, %v349
  %351 = vadd.xlane.f32.xlu0 %v350
  %v352 = vpop.xlane.xlu0 %351
  %v353 = vsel %vm136, %v117, 0.0
  %v354 = vadd.f32 %v116, %v353
  %355 = vadd.xlane.f32.xlu0 %v354
  %v356 = vpop.xlane.xlu0 %355
  %v357 = vsel %vm136, %v119, 0.0
  %v358 = vadd.f32 %v118, %v357
  %359 = vadd.xlane.f32.xlu0 %v358
  %v360 = vpop.xlane.xlu0 %359
  %v361 = vsel %vm136, %v121, 0.0
  %v362 = vadd.f32 %v120, %v361
  %363 = vadd.xlane.f32.xlu0 %v362
  %v364 = vpop.xlane.xlu0 %363
  %v365 = vsel %vm136, %v123, 0.0
  %v366 = vadd.f32 %v122, %v365
  %367 = vadd.xlane.f32.xlu0 %v366
  %v368 = vpop.xlane.xlu0 %367
  %v369 = vsel %vm136, %v125, 0.0
  %v370 = vadd.f32 %v124, %v369
  %371 = vadd.xlane.f32.xlu0 %v370
  %v372 = vpop.xlane.xlu0 %371
  %v373 = vsel %vm136, %v127, 0.0
  %v374 = vadd.f32 %v126, %v373
  %375 = vadd.xlane.f32.xlu0 %v374
  %v376 = vpop.xlane.xlu0 %375
  %v377 = vsel %vm136, %v129, 0.0
  %v378 = vadd.f32 %v128, %v377
  %379 = vadd.xlane.f32.xlu0 %v378
  %v380 = vpop.xlane.xlu0 %379
  %v381 = vsel %vm136, %v131, 0.0
  %v382 = vadd.f32 %v130, %v381
  %383 = vadd.xlane.f32.xlu0 %v382
  %v384 = vpop.xlane.xlu0 %383
  %v385 = vsel %vm136, %v133, 0.0
  %v386 = vadd.f32 %v132, %v385
  %387 = vadd.xlane.f32.xlu0 %v386
  %v388 = vpop.xlane.xlu0 %387
  %v389 = vsel %vm136, %v135, 0.0
  %v390 = vadd.f32 %v134, %v389
  %391 = vadd.xlane.f32.xlu0 %v390
  %v392 = vpop.xlane.xlu0 %391
  %vm393 = vcmask 7168
  %394 = vst.msk [vmem:[%s1] sm:$0xff] %vm393, %v140
  %395 = vst.msk [vmem:[%s1 + $0x8] sm:$0xff] %vm393, %v144
  %396 = vst.msk [vmem:[%s1 + $0x10] sm:$0xff] %vm393, %v148
  %397 = vst.msk [vmem:[%s1 + $0x18] sm:$0xff] %vm393, %v152
  %398 = vst.msk [vmem:[%s1 + $0x20] sm:$0xff] %vm393, %v156
  %399 = vst.msk [vmem:[%s1 + $0x28] sm:$0xff] %vm393, %v160
  %400 = vst.msk [vmem:[%s1 + $0x30] sm:$0xff] %vm393, %v164
  %401 = vst.msk [vmem:[%s1 + $0x38] sm:$0xff] %vm393, %v168
  %402 = vst.msk [vmem:[%s1 + $0x40] sm:$0xff] %vm393, %v172
  %403 = vst.msk [vmem:[%s1 + $0x48] sm:$0xff] %vm393, %v176
  %404 = vst.msk [vmem:[%s1 + $0x50] sm:$0xff] %vm393, %v180
  %405 = vst.msk [vmem:[%s1 + $0x58] sm:$0xff] %vm393, %v184
  %406 = vst.msk [vmem:[%s1 + $0x60] sm:$0xff] %vm393, %v188
  %407 = vst.msk [vmem:[%s1 + $0x68] sm:$0xff] %vm393, %v192
  %408 = vst.msk [vmem:[%s1 + $0x70] sm:$0xff] %vm393, %v196
  %409 = vst.msk [vmem:[%s1 + $0x78] sm:$0xff] %vm393, %v200
  %410 = vst.msk [vmem:[%s1 + $0x80] sm:$0xff] %vm393, %v204
  %411 = vst.msk [vmem:[%s1 + $0x88] sm:$0xff] %vm393, %v208
  %412 = vst.msk [vmem:[%s1 + $0x90] sm:$0xff] %vm393, %v212
  %413 = vst.msk [vmem:[%s1 + $0x98] sm:$0xff] %vm393, %v216
  %414 = vst.msk [vmem:[%s1 + $0xa0] sm:$0xff] %vm393, %v220
  %415 = vst.msk [vmem:[%s1 + $0xa8] sm:$0xff] %vm393, %v224
  %416 = vst.msk [vmem:[%s1 + $0xb0] sm:$0xff] %vm393, %v228
  %417 = vst.msk [vmem:[%s1 + $0xb8] sm:$0xff] %vm393, %v232
  %418 = vst.msk [vmem:[%s1 + $0xc0] sm:$0xff] %vm393, %v236
  %419 = vst.msk [vmem:[%s1 + $0xc8] sm:$0xff] %vm393, %v240
  %420 = vst.msk [vmem:[%s1 + $0xd0] sm:$0xff] %vm393, %v244
  %421 = vst.msk [vmem:[%s1 + $0xd8] sm:$0xff] %vm393, %v248
  %422 = vst.msk [vmem:[%s1 + $0xe0] sm:$0xff] %vm393, %v252
  %423 = vst.msk [vmem:[%s1 + $0xe8] sm:$0xff] %vm393, %v256
  %424 = vst.msk [vmem:[%s1 + $0xf0] sm:$0xff] %vm393, %v260
  %425 = vst.msk [vmem:[%s1 + $0xf8] sm:$0xff] %vm393, %v264
  %426 = vst.msk [vmem:[%s1 + $0x100] sm:$0xff] %vm393, %v268
  %427 = vst.msk [vmem:[%s1 + $0x108] sm:$0xff] %vm393, %v272
  %428 = vst.msk [vmem:[%s1 + $0x110] sm:$0xff] %vm393, %v276
  %429 = vst.msk [vmem:[%s1 + $0x118] sm:$0xff] %vm393, %v280
  %430 = vst.msk [vmem:[%s1 + $0x120] sm:$0xff] %vm393, %v284
  %431 = vst.msk [vmem:[%s1 + $0x128] sm:$0xff] %vm393, %v288
  %432 = vst.msk [vmem:[%s1 + $0x130] sm:$0xff] %vm393, %v292
  %433 = vst.msk [vmem:[%s1 + $0x138] sm:$0xff] %vm393, %v296
  %434 = vst.msk [vmem:[%s1 + $0x140] sm:$0xff] %vm393, %v300
  %435 = vst.msk [vmem:[%s1 + $0x148] sm:$0xff] %vm393, %v304
  %436 = vst.msk [vmem:[%s1 + $0x150] sm:$0xff] %vm393, %v308
  %437 = vst.msk [vmem:[%s1 + $0x158] sm:$0xff] %vm393, %v312
  %438 = vst.msk [vmem:[%s1 + $0x160] sm:$0xff] %vm393, %v316
  %439 = vst.msk [vmem:[%s1 + $0x168] sm:$0xff] %vm393, %v320
  %440 = vst.msk [vmem:[%s1 + $0x170] sm:$0xff] %vm393, %v324
  %441 = vst.msk [vmem:[%s1 + $0x178] sm:$0xff] %vm393, %v328
  %442 = vst.msk [vmem:[%s1 + $0x180] sm:$0xff] %vm393, %v332
  %443 = vst.msk [vmem:[%s1 + $0x188] sm:$0xff] %vm393, %v336
  %444 = vst.msk [vmem:[%s1 + $0x190] sm:$0xff] %vm393, %v340
  %445 = vst.msk [vmem:[%s1 + $0x198] sm:$0xff] %vm393, %v344
  %446 = vst.msk [vmem:[%s1 + $0x1a0] sm:$0xff] %vm393, %v348
  %447 = vst.msk [vmem:[%s1 + $0x1a8] sm:$0xff] %vm393, %v352
  %448 = vst.msk [vmem:[%s1 + $0x1b0] sm:$0xff] %vm393, %v356
  %449 = vst.msk [vmem:[%s1 + $0x1b8] sm:$0xff] %vm393, %v360
  %450 = vst.msk [vmem:[%s1 + $0x1c0] sm:$0xff] %vm393, %v364
  %451 = vst.msk [vmem:[%s1 + $0x1c8] sm:$0xff] %vm393, %v368
  %452 = vst.msk [vmem:[%s1 + $0x1d0] sm:$0xff] %vm393, %v372
  %453 = vst.msk [vmem:[%s1 + $0x1d8] sm:$0xff] %vm393, %v376
  %454 = vst.msk [vmem:[%s1 + $0x1e0] sm:$0xff] %vm393, %v380
  %455 = vst.msk [vmem:[%s1 + $0x1e8] sm:$0xff] %vm393, %v384
  %456 = vst.msk [vmem:[%s1 + $0x1f0] sm:$0xff] %vm393, %v388
  %457 = vst.msk [vmem:[%s1 + $0x1f8] sm:$0xff] %vm393, %v392
  // Predicated region
  $region6: #{_sum_last_dim_2d.1} parent=0 // pred_check
    _
  $region7: #{_sum_last_dim_2d.1} parent=0 // pred_check_branch
    %459 = sbr.rel (0) target = $region9
  $region8: #{_sum_last_dim_2d.1} parent=0 // pred_region
    _
  $region9: #{_sum_last_dim_2d.1} parent=0 // pred_fallthru
    _
  // Predicated region
  $region10: #{_sum_last_dim_2d.1} parent=0 // pred_check
    _
  $region11: #{_sum_last_dim_2d.1} parent=0 // pred_check_branch
    %461 = sbr.rel (0) target = $region13
  $region12: #{_sum_last_dim_2d.1} parent=0 // pred_region
    _
  $region13: #{_sum_last_dim_2d.1} parent=0 // pred_fallthru
    _

</llo_original>
